<compile_context>
chip_gen: v7x
topology: tpu7x:2x2x1
jax: 0.10.0
libtpu: 0.0.40
codegen_flags: <defaults>
</compile_context>

<pallas_src>
import functools

import jax
import jax.numpy as jnp
from jax import lax
from jax.experimental import pallas as pl
from jax.experimental.pallas import tpu as pltpu

EPS = 1e-5
LANES = 128


def model_kernel(slab_ref, out_ref, *, true_len):
    # slab_ref: (2, 128) f32 VMEM.  Row 0 = x (zero-padded), row 1 = (w, b, 0...).
    # out_ref:  (1, 1) f32 SMEM scalar output.
    slab = slab_ref[...]                 # one vector load of the whole slab
    x_row = slab[0:1, :]                 # (1, 128)
    wb_row = slab[1:2, :]                # (1, 128)

    inv_n = jnp.float32(1.0 / true_len)
    n_f = jnp.float32(true_len)

    # ReLU (padded lanes are already 0 and stay 0 -> sums unaffected).
    r = jnp.maximum(x_row, 0.0)

    # The only two cross-lane (XLU) reductions; independent, so they co-issue.
    sum_r = jnp.sum(r, keepdims=True)        # (1, 1)
    sum_rr = jnp.sum(r * r, keepdims=True)   # (1, 1)
    r0 = r[:, 0:1]                           # (1, 1)

    # BatchNorm2d(1) training-mode statistics (biased variance), one-pass form.
    mean = sum_r * inv_n
    var = jnp.maximum(sum_rr * inv_n - mean * mean, 0.0)   # clamp cancellation
    denom = var + EPS
    rstd = lax.rsqrt(denom)                                 # EUP, off the VALU

    w = wb_row[:, 0:1]                       # (1, 1)
    b = wb_row[:, 1:2]                       # (1, 1)

    # Closed-form conv1d(v1, v1) = sum(v1^2), with sum(xn)=0, sum(xn^2)=L*var/(var+eps).
    s = (w * w) * (n_f * var / denom) + n_f * (b * b)       # (1, 1)
    # bias term: v1[0]  (see TODO in header)
    bias = w * (r0 - mean) * rstd + b                       # (1, 1)

    final = jnp.maximum(s + bias, 0.0)                      # final torch.relu, (1, 1)
    # Scalar store to the SMEM output (reduce-to-scalar of a (1,1) is exact).
    out_ref[0, 0] = jnp.sum(final)


def model_forward(x1, conv_w, conv_b):
    """x1: (1, 1, L) f32, conv_w: (1,1,1,1), conv_b: (1,).  Returns (1,1,1)."""
    n, c, L = x1.shape
    assert n == 1 and c == 1 and L <= LANES

    # Pack everything into a single (2, 128) VMEM slab -> one input DMA descriptor.
    slab = jnp.zeros((2, LANES), jnp.float32)
    slab = slab.at[0, :L].set(x1.reshape(L).astype(jnp.float32))
    slab = slab.at[1, 0].set(conv_w.reshape(()).astype(jnp.float32))
    slab = slab.at[1, 1].set(conv_b.reshape(()).astype(jnp.float32))

    out = pl.pallas_call(
        functools.partial(model_kernel, true_len=L),
        out_shape=jax.ShapeDtypeStruct((1, 1), jnp.float32),
        in_specs=[
            pl.BlockSpec(memory_space=pltpu.MemorySpace.VMEM),   # (2, 128) slab
        ],
        out_specs=pl.BlockSpec(memory_space=pltpu.MemorySpace.SMEM),  # scalar out
        cost_estimate=pl.CostEstimate(
            flops=6 * L,
            transcendentals=1,
            bytes_accessed=4 * (2 * LANES) + 4,
        ),
    )(slab)
    return out.reshape(1, 1, 1)


if __name__ == "__main__":
    key = jax.random.PRNGKey(0)
    k_x, k_w, k_b = jax.random.split(key, 3)

    # Input matching the module's example: (1, 1, 112)
    x1 = jax.random.normal(k_x, (1, 1, 112), dtype=jnp.float32)

    # Deterministic Conv2d(1,1,(1,1)) parameters (uniform in +/- 1/sqrt(fan_in)=1).
    conv_w = jax.random.uniform(k_w, (1, 1, 1, 1), minval=-1.0, maxval=1.0,
                                dtype=jnp.float32)
    conv_b = jax.random.uniform(k_b, (1,), minval=-1.0, maxval=1.0,
                                dtype=jnp.float32)

    out = model_forward(x1, conv_w, conv_b)
    jax.block_until_ready(out)
    assert out.shape == (1, 1, 1)
    print("KERNEL_OK")
</pallas_src>

<mosaic_0001>
module attributes {stable_mosaic.version = 11 : i64} {
  func.func @model_kernel(%arg0: memref<2x128xf32, #tpu.memory_space<vmem>>, %arg1: memref<1x1xf32, #tpu.memory_space<smem>>) attributes {dimension_semantics = [], scalar_prefetch = 0 : i64, scratch_operands = 0 : i64, tpu.core_type = #tpu.core_type<tc>} {
    %c0 = arith.constant 0 : index
    %c0_0 = arith.constant 0 : index
    %0 = vector.load %arg0[%c0, %c0_0] : memref<2x128xf32, #tpu.memory_space<vmem>>, vector<2x128xf32>
    %1 = vector.extract_strided_slice %0 {offsets = [0, 0], sizes = [1, 128], strides = [1, 1]} : vector<2x128xf32> to vector<1x128xf32>
    %2 = vector.extract_strided_slice %0 {offsets = [1, 0], sizes = [1, 128], strides = [1, 1]} : vector<2x128xf32> to vector<1x128xf32>
    %cst = arith.constant 0.000000e+00 : f32
    %3 = vector.broadcast %cst : f32 to vector<1x128xf32>
    %4 = arith.maximumf %1, %3 : vector<1x128xf32>
    %5 = vector.shape_cast %4 : vector<1x128xf32> to vector<1x1x128xf32>
    %cst_1 = arith.constant dense<0.000000e+00> : vector<1xf32>
    %6 = vector.multi_reduction <add>, %5, %cst_1 [1, 2] : vector<1x1x128xf32> to vector<1xf32>
    %7 = vector.shape_cast %6 : vector<1xf32> to vector<1x1x1xf32>
    %8 = vector.extract %7[0, 0, 0] : f32 from vector<1x1x1xf32>
    %9 = vector.broadcast %8 : f32 to vector<1x1xf32>
    %10 = arith.mulf %4, %4 : vector<1x128xf32>
    %11 = vector.shape_cast %10 : vector<1x128xf32> to vector<1x1x128xf32>
    %cst_2 = arith.constant dense<0.000000e+00> : vector<1xf32>
    %12 = vector.multi_reduction <add>, %11, %cst_2 [1, 2] : vector<1x1x128xf32> to vector<1xf32>
    %13 = vector.shape_cast %12 : vector<1xf32> to vector<1x1x1xf32>
    %14 = vector.extract %13[0, 0, 0] : f32 from vector<1x1x1xf32>
    %15 = vector.broadcast %14 : f32 to vector<1x1xf32>
    %16 = vector.extract_strided_slice %4 {offsets = [0, 0], sizes = [1, 1], strides = [1, 1]} : vector<1x128xf32> to vector<1x1xf32>
    %cst_3 = arith.constant 0.00892857183 : f32
    %17 = vector.broadcast %cst_3 : f32 to vector<1x1xf32>
    %18 = arith.mulf %9, %17 : vector<1x1xf32>
    %cst_4 = arith.constant 0.00892857183 : f32
    %19 = vector.broadcast %cst_4 : f32 to vector<1x1xf32>
    %20 = arith.mulf %15, %19 : vector<1x1xf32>
    %21 = arith.mulf %18, %18 : vector<1x1xf32>
    %22 = arith.subf %20, %21 : vector<1x1xf32>
    %cst_5 = arith.constant 0.000000e+00 : f32
    %23 = vector.broadcast %cst_5 : f32 to vector<1x1xf32>
    %24 = arith.maximumf %22, %23 : vector<1x1xf32>
    %cst_6 = arith.constant 9.99999974E-6 : f32
    %25 = vector.broadcast %cst_6 : f32 to vector<1x1xf32>
    %26 = arith.addf %24, %25 : vector<1x1xf32>
    %27 = math.rsqrt %26 : vector<1x1xf32>
    %28 = vector.extract_strided_slice %2 {offsets = [0, 0], sizes = [1, 1], strides = [1, 1]} : vector<1x128xf32> to vector<1x1xf32>
    %29 = vector.extract_strided_slice %2 {offsets = [0, 1], sizes = [1, 1], strides = [1, 1]} : vector<1x128xf32> to vector<1x1xf32>
    %30 = arith.mulf %28, %28 : vector<1x1xf32>
    %cst_7 = arith.constant 1.120000e+02 : f32
    %31 = vector.broadcast %cst_7 : f32 to vector<1x1xf32>
    %32 = arith.mulf %31, %24 : vector<1x1xf32>
    %33 = arith.divf %32, %26 : vector<1x1xf32>
    %34 = arith.mulf %30, %33 : vector<1x1xf32>
    %35 = arith.mulf %29, %29 : vector<1x1xf32>
    %cst_8 = arith.constant 1.120000e+02 : f32
    %36 = vector.broadcast %cst_8 : f32 to vector<1x1xf32>
    %37 = arith.mulf %36, %35 : vector<1x1xf32>
    %38 = arith.addf %34, %37 : vector<1x1xf32>
    %39 = arith.subf %16, %18 : vector<1x1xf32>
    %40 = arith.mulf %28, %39 : vector<1x1xf32>
    %41 = arith.mulf %40, %27 : vector<1x1xf32>
    %42 = arith.addf %41, %29 : vector<1x1xf32>
    %43 = arith.addf %38, %42 : vector<1x1xf32>
    %cst_9 = arith.constant 0.000000e+00 : f32
    %44 = vector.broadcast %cst_9 : f32 to vector<1x1xf32>
    %45 = arith.maximumf %43, %44 : vector<1x1xf32>
    %46 = vector.shape_cast %45 : vector<1x1xf32> to vector<1x1x1xf32>
    %cst_10 = arith.constant dense<0.000000e+00> : vector<1xf32>
    %47 = vector.multi_reduction <add>, %46, %cst_10 [1, 2] : vector<1x1x1xf32> to vector<1xf32>
    %48 = vector.shape_cast %47 : vector<1xf32> to vector<1x1x1xf32>
    %49 = vector.extract %48[0, 0, 0] : f32 from vector<1x1x1xf32>
    %c0_11 = arith.constant 0 : index
    %c0_12 = arith.constant 0 : index
    %50 = memref.load %arg1[%c0_11, %c0_12] : memref<1x1xf32, #tpu.memory_space<smem>>
    memref.store %49, %arg1[%c0_11, %c0_12] : memref<1x1xf32, #tpu.memory_space<smem>>
    return
  }
}

</mosaic_0001>

<llo_original>
// kernel: tpu_custom_call.1
$region0: #{tpu_custom_call.1}
  #allocation0 [shape = 'u32[]', space=smem, size = 0x4, offset = 0x4, fixed_abs, tag = 'smem constant byte address 0x4 - core index']
  #allocation1 [shape = 'u32[144,128]{1,0:T(1,128)}', space=vmem, size = 0x12000, scoped, tag = 'internal scratch']
  %s0 = inlined_call_operand.hbm [shape: f32[2,128], index: 0, kind: input, shape index: {}]
  %s1 = inlined_call_operand.hbm [shape: f32[1,1], index: 1, kind: output, shape index: {}]
  %s2 = sld [smem:[#allocation0]]
  $region18: #{tpu_custom_call.1} parent=0
    _
  %s4 = ssub.s32 1, %s2
  %s5 = scalar_select 0, %s4, %s2
  $region1: #{tpu_custom_call.1} parent=0
    #allocation2 [shape = 'u8[1024]{0}', space=vmem, size = 0x400, scoped, tag = 'input window, operand 0, single buffered']
    #allocation3 [shape = 's32[1]{0}', space=sflag, size = 0x4, scoped, tag = 'scoped memory for tpu_custom_call.1']
    #allocation4 [shape = 's32[1]{0}', space=sflag, size = 0x4, scoped, tag = 'scoped memory for tpu_custom_call.1']
    #allocation5 [shape = 'u8[512]{0}', space=smem, size = 0x200, scoped, tag = 'output window, operand 0, single buffered']
    %6 = vsyncpa [#allocation3], 0
    %7 = vsyncpa [#allocation4], 0
    // Predicated region
    $region2: #{tpu_custom_call.1} parent=1 // pred_check
      _
    $region3: #{tpu_custom_call.1} parent=1 // pred_check_branch
      %9 = sbr.rel (0) target = $region5
    $region4: #{tpu_custom_call.1} parent=1 // pred_region
      %s11 = ssub.s32 32, 32
      %12 = vsyncadd [#allocation3], %s11
      %s14 = sshll.u32 [#allocation2], 4
      %s15 = int_to_ptr.vmem [resolvable:$true] %s14
      %17 = dma.hbm_to_vmem [thread:$0]  %s0, 32, %s15, [#allocation3]
    $region5: #{tpu_custom_call.1} parent=1 // pred_fallthru
      _
    // Predicated region
    $region6: #{tpu_custom_call.1} parent=1 // pred_check
      _
    $region7: #{tpu_custom_call.1} parent=1 // pred_check_branch
      %19 = sbr.rel (0) target = $region9
    $region8: #{tpu_custom_call.1} parent=1 // pred_region
      %20 = dma.done [#allocation3], 32
    $region9: #{tpu_custom_call.1} parent=1 // pred_fallthru
      _
    %v21 = vld [vmem:[#allocation2] sm:$0x3]
    %v22 = vmax.f32 %v21, 0.0
    %vm23 = vcmask 1040384
    %v24 = vsel %vm23, %v22, 0.0
    %25 = vadd.xlane.f32.xlu0 %v24
    %v26 = vpop.xlane.xlu0 %25
    %v27 = vrot.slane %v26, 4
    %v28 = vadd.f32 %v26, %v27
    %v29 = vrot.slane %v28, 2
    %v30 = vadd.f32 %v28, %v29
    %v31 = vrot.slane %v30, 1
    %v32 = vadd.f32 %v30, %v31
    %s33 = vtos %v32
    %v34 = vstv %s33
    %v35 = vmul.f32 %v22, %v22
    %v36 = vsel %vm23, %v35, 0.0
    %37 = vadd.xlane.f32.xlu0 %v36
    %v38 = vpop.xlane.xlu0 %37
    %v39 = vrot.slane %v38, 4
    %v40 = vadd.f32 %v38, %v39
    %v41 = vrot.slane %v40, 2
    %v42 = vadd.f32 %v40, %v41
    %v43 = vrot.slane %v42, 1
    %v44 = vadd.f32 %v42, %v43
    %s45 = vtos %v44
    %v46 = vstv %s45
    %v47 = vmul.f32 %v34, 0.008928572
    %v48 = vmul.f32 %v46, 0.008928572
    %v49 = vmul.f32 %v47, %v47
    %v50 = vsub.f32 %v48, %v49
    %v51 = vmax.f32 %v50, 0.0
    %v52 = vadd.f32 %v51, 1e-05
    %v53 = vrsqrt.pop %v52
    %v54 = vmul.f32 %v21, %v21
    %v55 = vmul.f32 %v51, 112.0
    %v56 = vrcp.pop %v52
    %v57 = vmul.f32 %v55, %v56
    %v58 = vmul.f32 %v54, %v57
    %v59 = vmul.f32 %v54, 112.0
    %61 = vrot.lane.b32.xlu0 %v59, 127
    %v62 = vpop.permute.xlu0 %61
    %v64 = vadd.f32 %v58, %v62
    %v65 = vsub.f32 %v22, %v47
    %v67 = vrot.slane %v65, 7
    %v69 = vmul.f32 %v21, %v67
    %v70 = vmul.f32 %v69, %v53
    %72 = vrot.lane.b32.xlu0 %v21, 127
    %v73 = vpop.permute.xlu0 %72
    %v75 = vadd.f32 %v70, %v73
    %v76 = vadd.f32 %v64, %v75
    %v77 = vmax.f32 %v76, 0.0
    %v78 = vadd.f32 %v77, 0.0
    %v80 = vrot.slane %v78, 1
    %s82 = vtos %v80
    %s83 = scalar_lea.smem [#allocation5], 0
    %84 = sst [smem:[%s83]] %s82
    // Predicated region
    $region10: #{tpu_custom_call.1} parent=1 // pred_check
      _
    $region11: #{tpu_custom_call.1} parent=1 // pred_check_branch
      %86 = sbr.rel (0) target = $region13
    $region12: #{tpu_custom_call.1} parent=1 // pred_region
      %s88 = ssub.s32 16, 16
      %89 = vsyncadd [#allocation4], %s88
      %92 = dma.smem_to_hbm [#allocation5], 16, %s1, [#allocation4]
    $region13: #{tpu_custom_call.1} parent=1 // pred_fallthru
      _
    // Predicated region
    $region14: #{tpu_custom_call.1} parent=1 // pred_check
      _
    $region15: #{tpu_custom_call.1} parent=1 // pred_check_branch
      %94 = sbr.rel (0) target = $region17
    $region16: #{tpu_custom_call.1} parent=1 // pred_region
      %95 = dma.done [#allocation4], 16
    $region17: #{tpu_custom_call.1} parent=1 // pred_fallthru
      _
    %96 = sfence
    %97 = vsyncpa [#allocation3], 1
    %98 = vsyncpa [#allocation4], 1

</llo_original>
